<compile_context>
chip_gen: v7x
topology: tpu7x:2x2x1
jax: 0.10.0
libtpu: 0.0.40
codegen_flags: <defaults>
</compile_context>

<pallas_src>
import jax
import jax.numpy as jnp
from jax.experimental import pallas as pl
from jax.experimental.pallas import tpu as pltpu

HIDDEN = 32          # nn.RNN hidden_size
INPUT_SIZE = 1       # nn.RNN input_size
HP = 64              # lane-padded hidden width: [ W_hh^T | W_out^T | zeros ]


def rnn_kernel(x_ref, h0_ref, p_ref, y_ref, hT_ref):
    # x_ref : (T+1, B, 1) time-major input; last row is zeros (final y step)
    # h0_ref: (B, HP)     initial hidden state, lane-padded to HP
    # p_ref : (HP+8, HP)  packed params:
    #           rows 0:H   : cols 0:H = W_hh^T,  col H = W_out^T
    #           row  HP    : cols 0:H = W_ih^T (input_size == 1)
    #           row  HP+1  : cols 0:H = b_ih + b_hh,  col H = b_out
    #           row  HP+2  : one-hot selector for column H (y extraction)
    # y_ref : (B, T)      hT_ref: (B, HIDDEN)
    T = x_ref.shape[0] - 1

    w_aug = p_ref[0:HP, :]                      # (HP, HP)  augmented weights
    wih = p_ref[HP:HP + 1, :]                   # (1, HP)
    bias = p_ref[HP + 1:HP + 2, :]              # (1, HP)   col H carries b_out
    sel = p_ref[HP + 2:HP + 3, :]               # (1, HP)   one-hot at col H

    # Input projection for ALL timesteps at once (pure VPU lane-broadcast,
    # the K=1 "matmul" never touches the MXU) — off the serial chain.
    pre = x_ref[...] * wih[None] + bias[None]   # (T+1, B, HP)

    # Serial recurrence, fully unrolled.  The Linear(32,1) projection rides
    # along in column H of the same MXU matmul: s_t[:, H] == y_{t-1}.
    h = h0_ref[...]                             # (B, HP) lane-dense
    s_hist = []
    for t in range(T):
        s = pre[t] + jnp.dot(h, w_aug, preferred_element_type=jnp.float32)
        s_hist.append(s)
        h = jnp.tanh(s)                         # cols >= H are don't-care
    hT_ref[...] = h[:, :HIDDEN]

    # One trailing matmul (off the serial chain) produces y_{T-1}.
    s_hist.append(pre[T] + jnp.dot(h, w_aug, preferred_element_type=jnp.float32))

    # y_t = s_{t+1}[:, H]; extract via one-hot multiply + lane reduce and
    # store the whole (B, T) slab once.
    s_stack = jnp.stack(s_hist[1:], axis=1)     # (B, T, HP), vreg-resident
    y_ref[...] = jnp.sum(s_stack * sel[None], axis=-1)


def prepare_params(params):
    """One-time packing of all parameters into a single kernel operand."""
    H = HIDDEN
    p = jnp.zeros((HP + 8, HP), jnp.float32)
    p = p.at[:H, :H].set(params["w_hh"].T.astype(jnp.float32))            # W_hh^T
    p = p.at[:H, H].set(params["w_out"].reshape(H).astype(jnp.float32))   # W_out^T
    p = p.at[HP, :H].set(params["w_ih"].reshape(H).astype(jnp.float32))   # W_ih^T
    p = p.at[HP + 1, :H].set((params["b_ih"] + params["b_hh"]).astype(jnp.float32))
    p = p.at[HP + 1, H].set(params["b_out"].reshape(()).astype(jnp.float32))
    p = p.at[HP + 2, H].set(1.0)                                          # selector
    return p


@jax.jit
def rnn_forward(x, h0, p_packed):
    """x: (B, T, 1) batch_first.  h0: (B, HIDDEN).  p_packed: (HP+8, HP).

    Returns (outs (B, T, 1), h_state (1, B, HIDDEN)) — same as the torch module."""
    B, T, _ = x.shape

    # Time-major (T, B, 1) plus one zero row: the extra step's matmul yields
    # y_{T-1} and its "bias" row contributes b_out in column H.
    x_tm = jnp.transpose(x.astype(jnp.float32), (1, 0, 2))
    x_tm = jnp.concatenate([x_tm, jnp.zeros((1, B, 1), jnp.float32)], axis=0)
    h0p = jnp.pad(h0.astype(jnp.float32), ((0, 0), (0, HP - HIDDEN)))     # (B, HP)

    vmem = pl.BlockSpec(memory_space=pltpu.MemorySpace.VMEM)
    y_bt, hT = pl.pallas_call(
        rnn_kernel,
        out_shape=(jax.ShapeDtypeStruct((B, T), jnp.float32),
                   jax.ShapeDtypeStruct((B, HIDDEN), jnp.float32)),
        in_specs=[vmem, vmem, vmem],
        out_specs=(vmem, vmem),
    )(x_tm, h0p, p_packed)

    return y_bt[..., None], hT[None]


def rnn_apply(x, h_state, p_packed):
    """Handles the torch-style `h_state=None` convention outside the jit."""
    B = x.shape[0]
    h0 = (jnp.zeros((B, HIDDEN), jnp.float32) if h_state is None
          else jnp.asarray(h_state, jnp.float32).reshape(B, HIDDEN))
    return rnn_forward(x, h0, p_packed)


def init_params(key):
    # PyTorch default init: U(-1/sqrt(hidden), 1/sqrt(hidden))
    bound = 1.0 / jnp.sqrt(jnp.float32(HIDDEN))
    ks = jax.random.split(key, 6)
    u = lambda k, shape: jax.random.uniform(k, shape, jnp.float32, -bound, bound)
    return {
        "w_ih": u(ks[0], (HIDDEN, INPUT_SIZE)),   # weight_ih_l0
        "w_hh": u(ks[1], (HIDDEN, HIDDEN)),       # weight_hh_l0
        "b_ih": u(ks[2], (HIDDEN,)),
        "b_hh": u(ks[3], (HIDDEN,)),
        "w_out": u(ks[4], (1, HIDDEN)),           # Linear.weight
        "b_out": u(ks[5], (1,)),                  # Linear.bias
    }


def reference(x, h_state, params):
    """Pure-JAX re-implementation of the torch module (correctness oracle)."""
    B, T, _ = x.shape
    h = (jnp.zeros((B, HIDDEN), jnp.float32) if h_state is None
         else h_state.reshape(B, HIDDEN))
    outs = []
    for t in range(T):
        h = jnp.tanh(x[:, t, :] @ params["w_ih"].T + params["b_ih"]
                     + h @ params["w_hh"].T + params["b_hh"])
        outs.append(h @ params["w_out"].T + params["b_out"])
    return jnp.stack(outs, axis=1), h[None]


if __name__ == "__main__":
    key = jax.random.PRNGKey(0)
    k_param, k_x = jax.random.split(key)

    params = init_params(k_param)
    p_packed = prepare_params(params)          # hoisted, one-time param prep

    B, T = 2, 8
    x = jax.random.normal(k_x, (B, T, 1), jnp.float32)
    h_state = None                             # same as the tutorial's first call

    outs, h_new = rnn_apply(x, h_state, p_packed)
    outs = jax.block_until_ready(outs)
    h_new = jax.block_until_ready(h_new)

    ref_outs, ref_h = reference(x, h_state, params)
    assert outs.shape == (B, T, 1) and h_new.shape == (1, B, HIDDEN)
    assert jnp.allclose(outs, ref_outs, atol=1e-5, rtol=1e-5)
    assert jnp.allclose(h_new, ref_h, atol=1e-5, rtol=1e-5)

    # second call feeding the hidden state back in (like the training loop);
    # reuses the already-compiled jit executable.
    outs2, h_new2 = rnn_apply(x, h_new, p_packed)
    ref_outs2, ref_h2 = reference(x, h_new, params)
    jax.block_until_ready(outs2)
    assert jnp.allclose(outs2, ref_outs2, atol=1e-5, rtol=1e-5)
    assert jnp.allclose(h_new2, ref_h2, atol=1e-5, rtol=1e-5)

    print("KERNEL_OK")
</pallas_src>

<mosaic_0001>
module attributes {stable_mosaic.version = 11 : i64} {
  func.func @rnn_kernel(%arg0: memref<9x2x1xf32, #tpu.memory_space<vmem>>, %arg1: memref<2x64xf32, #tpu.memory_space<vmem>>, %arg2: memref<72x64xf32, #tpu.memory_space<vmem>>, %arg3: memref<2x8xf32, #tpu.memory_space<vmem>>, %arg4: memref<2x32xf32, #tpu.memory_space<vmem>>) attributes {dimension_semantics = [], scalar_prefetch = 0 : i64, scratch_operands = 0 : i64, tpu.core_type = #tpu.core_type<tc>} {
    %c0 = arith.constant 0 : index
    %c0_0 = arith.constant 0 : index
    %0 = vector.load %arg2[%c0, %c0_0] : memref<72x64xf32, #tpu.memory_space<vmem>>, vector<64x64xf32>
    %c64 = arith.constant 64 : index
    %c0_1 = arith.constant 0 : index
    %1 = vector.load %arg2[%c64, %c0_1] : memref<72x64xf32, #tpu.memory_space<vmem>>, vector<1x64xf32>
    %c65 = arith.constant 65 : index
    %c0_2 = arith.constant 0 : index
    %2 = vector.load %arg2[%c65, %c0_2] : memref<72x64xf32, #tpu.memory_space<vmem>>, vector<1x64xf32>
    %c66 = arith.constant 66 : index
    %c0_3 = arith.constant 0 : index
    %3 = vector.load %arg2[%c66, %c0_3] : memref<72x64xf32, #tpu.memory_space<vmem>>, vector<1x64xf32>
    %c0_4 = arith.constant 0 : index
    %c0_5 = arith.constant 0 : index
    %c0_6 = arith.constant 0 : index
    %4 = vector.load %arg0[%c0_4, %c0_5, %c0_6] : memref<9x2x1xf32, #tpu.memory_space<vmem>>, vector<9x2x1xf32>
    %5 = vector.shape_cast %1 : vector<1x64xf32> to vector<1x1x64xf32>
    %6 = vector.broadcast %4 : vector<9x2x1xf32> to vector<9x2x64xf32>
    %7 = vector.broadcast %5 : vector<1x1x64xf32> to vector<9x2x64xf32>
    %8 = arith.mulf %6, %7 : vector<9x2x64xf32>
    %9 = vector.shape_cast %2 : vector<1x64xf32> to vector<1x1x64xf32>
    %10 = vector.broadcast %9 : vector<1x1x64xf32> to vector<9x2x64xf32>
    %11 = arith.addf %8, %10 : vector<9x2x64xf32>
    %c0_7 = arith.constant 0 : index
    %c0_8 = arith.constant 0 : index
    %12 = vector.load %arg1[%c0_7, %c0_8] : memref<2x64xf32, #tpu.memory_space<vmem>>, vector<2x64xf32>
    %13 = vector.extract_strided_slice %11 {offsets = [0, 0, 0], sizes = [1, 2, 64], strides = [1, 1, 1]} : vector<9x2x64xf32> to vector<1x2x64xf32>
    %14 = vector.shape_cast %13 : vector<1x2x64xf32> to vector<2x64xf32>
    %cst = arith.constant dense<0.000000e+00> : vector<2x64xf32>
    %15 = tpu.matmul %12, %0, %cst {dimension_numbers = #tpu.dot_dimension_numbers<[1], [0], [0], [1], [0, 0, 1, 1], [], []>} : vector<2x64xf32>, vector<64x64xf32>, vector<2x64xf32> -> vector<2x64xf32>
    %16 = arith.addf %14, %15 : vector<2x64xf32>
    %17 = math.tanh %16 : vector<2x64xf32>
    %18 = vector.extract_strided_slice %11 {offsets = [1, 0, 0], sizes = [1, 2, 64], strides = [1, 1, 1]} : vector<9x2x64xf32> to vector<1x2x64xf32>
    %19 = vector.shape_cast %18 : vector<1x2x64xf32> to vector<2x64xf32>
    %cst_9 = arith.constant dense<0.000000e+00> : vector<2x64xf32>
    %20 = tpu.matmul %17, %0, %cst_9 {dimension_numbers = #tpu.dot_dimension_numbers<[1], [0], [0], [1], [0, 0, 1, 1], [], []>} : vector<2x64xf32>, vector<64x64xf32>, vector<2x64xf32> -> vector<2x64xf32>
    %21 = arith.addf %19, %20 : vector<2x64xf32>
    %22 = math.tanh %21 : vector<2x64xf32>
    %23 = vector.extract_strided_slice %11 {offsets = [2, 0, 0], sizes = [1, 2, 64], strides = [1, 1, 1]} : vector<9x2x64xf32> to vector<1x2x64xf32>
    %24 = vector.shape_cast %23 : vector<1x2x64xf32> to vector<2x64xf32>
    %cst_10 = arith.constant dense<0.000000e+00> : vector<2x64xf32>
    %25 = tpu.matmul %22, %0, %cst_10 {dimension_numbers = #tpu.dot_dimension_numbers<[1], [0], [0], [1], [0, 0, 1, 1], [], []>} : vector<2x64xf32>, vector<64x64xf32>, vector<2x64xf32> -> vector<2x64xf32>
    %26 = arith.addf %24, %25 : vector<2x64xf32>
    %27 = math.tanh %26 : vector<2x64xf32>
    %28 = vector.extract_strided_slice %11 {offsets = [3, 0, 0], sizes = [1, 2, 64], strides = [1, 1, 1]} : vector<9x2x64xf32> to vector<1x2x64xf32>
    %29 = vector.shape_cast %28 : vector<1x2x64xf32> to vector<2x64xf32>
    %cst_11 = arith.constant dense<0.000000e+00> : vector<2x64xf32>
    %30 = tpu.matmul %27, %0, %cst_11 {dimension_numbers = #tpu.dot_dimension_numbers<[1], [0], [0], [1], [0, 0, 1, 1], [], []>} : vector<2x64xf32>, vector<64x64xf32>, vector<2x64xf32> -> vector<2x64xf32>
    %31 = arith.addf %29, %30 : vector<2x64xf32>
    %32 = math.tanh %31 : vector<2x64xf32>
    %33 = vector.extract_strided_slice %11 {offsets = [4, 0, 0], sizes = [1, 2, 64], strides = [1, 1, 1]} : vector<9x2x64xf32> to vector<1x2x64xf32>
    %34 = vector.shape_cast %33 : vector<1x2x64xf32> to vector<2x64xf32>
    %cst_12 = arith.constant dense<0.000000e+00> : vector<2x64xf32>
    %35 = tpu.matmul %32, %0, %cst_12 {dimension_numbers = #tpu.dot_dimension_numbers<[1], [0], [0], [1], [0, 0, 1, 1], [], []>} : vector<2x64xf32>, vector<64x64xf32>, vector<2x64xf32> -> vector<2x64xf32>
    %36 = arith.addf %34, %35 : vector<2x64xf32>
    %37 = math.tanh %36 : vector<2x64xf32>
    %38 = vector.extract_strided_slice %11 {offsets = [5, 0, 0], sizes = [1, 2, 64], strides = [1, 1, 1]} : vector<9x2x64xf32> to vector<1x2x64xf32>
    %39 = vector.shape_cast %38 : vector<1x2x64xf32> to vector<2x64xf32>
    %cst_13 = arith.constant dense<0.000000e+00> : vector<2x64xf32>
    %40 = tpu.matmul %37, %0, %cst_13 {dimension_numbers = #tpu.dot_dimension_numbers<[1], [0], [0], [1], [0, 0, 1, 1], [], []>} : vector<2x64xf32>, vector<64x64xf32>, vector<2x64xf32> -> vector<2x64xf32>
    %41 = arith.addf %39, %40 : vector<2x64xf32>
    %42 = math.tanh %41 : vector<2x64xf32>
    %43 = vector.extract_strided_slice %11 {offsets = [6, 0, 0], sizes = [1, 2, 64], strides = [1, 1, 1]} : vector<9x2x64xf32> to vector<1x2x64xf32>
    %44 = vector.shape_cast %43 : vector<1x2x64xf32> to vector<2x64xf32>
    %cst_14 = arith.constant dense<0.000000e+00> : vector<2x64xf32>
    %45 = tpu.matmul %42, %0, %cst_14 {dimension_numbers = #tpu.dot_dimension_numbers<[1], [0], [0], [1], [0, 0, 1, 1], [], []>} : vector<2x64xf32>, vector<64x64xf32>, vector<2x64xf32> -> vector<2x64xf32>
    %46 = arith.addf %44, %45 : vector<2x64xf32>
    %47 = math.tanh %46 : vector<2x64xf32>
    %48 = vector.extract_strided_slice %11 {offsets = [7, 0, 0], sizes = [1, 2, 64], strides = [1, 1, 1]} : vector<9x2x64xf32> to vector<1x2x64xf32>
    %49 = vector.shape_cast %48 : vector<1x2x64xf32> to vector<2x64xf32>
    %cst_15 = arith.constant dense<0.000000e+00> : vector<2x64xf32>
    %50 = tpu.matmul %47, %0, %cst_15 {dimension_numbers = #tpu.dot_dimension_numbers<[1], [0], [0], [1], [0, 0, 1, 1], [], []>} : vector<2x64xf32>, vector<64x64xf32>, vector<2x64xf32> -> vector<2x64xf32>
    %51 = arith.addf %49, %50 : vector<2x64xf32>
    %52 = math.tanh %51 : vector<2x64xf32>
    %53 = vector.extract_strided_slice %52 {offsets = [0, 0], sizes = [2, 32], strides = [1, 1]} : vector<2x64xf32> to vector<2x32xf32>
    %c0_16 = arith.constant 0 : index
    %c0_17 = arith.constant 0 : index
    %54 = vector.load %arg4[%c0_16, %c0_17] : memref<2x32xf32, #tpu.memory_space<vmem>>, vector<2x32xf32>
    tpu.vector_store %arg4[%c0_16, %c0_17], %53 {strides = array<i32>} : memref<2x32xf32, #tpu.memory_space<vmem>>, vector<2x32xf32>,
    %55 = vector.extract_strided_slice %11 {offsets = [8, 0, 0], sizes = [1, 2, 64], strides = [1, 1, 1]} : vector<9x2x64xf32> to vector<1x2x64xf32>
    %56 = vector.shape_cast %55 : vector<1x2x64xf32> to vector<2x64xf32>
    %cst_18 = arith.constant dense<0.000000e+00> : vector<2x64xf32>
    %57 = tpu.matmul %52, %0, %cst_18 {dimension_numbers = #tpu.dot_dimension_numbers<[1], [0], [0], [1], [0, 0, 1, 1], [], []>} : vector<2x64xf32>, vector<64x64xf32>, vector<2x64xf32> -> vector<2x64xf32>
    %58 = arith.addf %56, %57 : vector<2x64xf32>
    %59 = vector.shape_cast %21 : vector<2x64xf32> to vector<2x1x64xf32>
    %60 = vector.shape_cast %26 : vector<2x64xf32> to vector<2x1x64xf32>
    %61 = vector.shape_cast %31 : vector<2x64xf32> to vector<2x1x64xf32>
    %62 = vector.shape_cast %36 : vector<2x64xf32> to vector<2x1x64xf32>
    %63 = vector.shape_cast %41 : vector<2x64xf32> to vector<2x1x64xf32>
    %64 = vector.shape_cast %46 : vector<2x64xf32> to vector<2x1x64xf32>
    %65 = vector.shape_cast %51 : vector<2x64xf32> to vector<2x1x64xf32>
    %66 = vector.shape_cast %58 : vector<2x64xf32> to vector<2x1x64xf32>
    %67 = tpu.concatenate %59, %60, %61, %62, %63, %64, %65, %66 in 1 : vector<2x1x64xf32>, vector<2x1x64xf32>, vector<2x1x64xf32>, vector<2x1x64xf32>, vector<2x1x64xf32>, vector<2x1x64xf32>, vector<2x1x64xf32>, vector<2x1x64xf32> -> vector<2x8x64xf32>
    %68 = vector.shape_cast %3 : vector<1x64xf32> to vector<1x1x64xf32>
    %69 = vector.broadcast %68 : vector<1x1x64xf32> to vector<2x8x64xf32>
    %70 = arith.mulf %67, %69 : vector<2x8x64xf32>
    %cst_19 = arith.constant dense<0.000000e+00> : vector<2x8xf32>
    %71 = vector.multi_reduction <add>, %70, %cst_19 [2] : vector<2x8x64xf32> to vector<2x8xf32>
    %c0_20 = arith.constant 0 : index
    %c0_21 = arith.constant 0 : index
    %72 = vector.load %arg3[%c0_20, %c0_21] : memref<2x8xf32, #tpu.memory_space<vmem>>, vector<2x8xf32>
    tpu.vector_store %arg3[%c0_20, %c0_21], %71 {strides = array<i32>} : memref<2x8xf32, #tpu.memory_space<vmem>>, vector<2x8xf32>,
    return
  }
}

</mosaic_0001>

<llo_original>
// kernel: rnn_forward.1
$region0: #{rnn_forward.1}
  #allocation0 [shape = 'u32[]', space=smem, size = 0x4, offset = 0x4, fixed_abs, tag = 'smem constant byte address 0x4 - core index']
  #allocation1 [shape = 'u32[144,128]{1,0:T(1,128)}', space=vmem, size = 0x12000, scoped, tag = 'internal scratch']
  %s0 = inlined_call_operand.vmem [shape: f32[9,2,1], index: 0, kind: input, shape index: {}]
  %s1 = inlined_call_operand.vmem [shape: f32[2,64], index: 1, kind: input, shape index: {}]
  %s2 = inlined_call_operand.vmem [shape: f32[72,64], index: 2, kind: input, shape index: {}]
  %s3 = inlined_call_operand.hbm [shape: f32[2,8], index: 3, kind: output, shape index: {0}]
  %s4 = inlined_call_operand.hbm [shape: f32[2,32], index: 4, kind: output, shape index: {1}]
  %5 = xla_tuple %s3, %s4
  %s6 = sld [smem:[#allocation0]]
  $region30: #{rnn_forward.1} parent=0
    _
  %s8 = ssub.s32 1, %s6
  %s9 = scalar_select 0, %s8, %s6
  $region1: #{rnn_forward.1} parent=0
    #allocation2 [shape = 'u8[1024]{0}', space=vmem, size = 0x400, scoped, tag = 'output window, operand 0, single buffered']
    #allocation3 [shape = 's32[1]{0}', space=sflag, size = 0x4, scoped, tag = 'scoped memory for rnn_forward.1']
    #allocation4 [shape = 'u8[1024]{0}', space=vmem, size = 0x400, scoped, tag = 'output window, operand 1, single buffered']
    #allocation5 [shape = 's32[1]{0}', space=sflag, size = 0x4, scoped, tag = 'scoped memory for rnn_forward.1']
    %10 = vsyncpa [#allocation3], 0
    %11 = vsyncpa [#allocation5], 0
    // Predicated region
    $region2: #{rnn_forward.1} parent=1 // pred_check
      _
    $region3: #{rnn_forward.1} parent=1 // pred_check_branch
      %13 = sbr.rel (0) target = $region5
    $region4: #{rnn_forward.1} parent=1 // pred_region
      _
    $region5: #{rnn_forward.1} parent=1 // pred_fallthru
      _
    // Predicated region
    $region6: #{rnn_forward.1} parent=1 // pred_check
      _
    $region7: #{rnn_forward.1} parent=1 // pred_check_branch
      %15 = sbr.rel (0) target = $region9
    $region8: #{rnn_forward.1} parent=1 // pred_region
      _
    $region9: #{rnn_forward.1} parent=1 // pred_fallthru
      _
    // Predicated region
    $region10: #{rnn_forward.1} parent=1 // pred_check
      _
    $region11: #{rnn_forward.1} parent=1 // pred_check_branch
      %17 = sbr.rel (0) target = $region13
    $region12: #{rnn_forward.1} parent=1 // pred_region
      _
    $region13: #{rnn_forward.1} parent=1 // pred_fallthru
      _
    %v18 = vld [vmem:[%s2] sm:$0xff]
    %v19 = vld [vmem:[%s2 + $0x8] sm:$0xff]
    %v20 = vld [vmem:[%s2 + $0x10] sm:$0xff]
    %v21 = vld [vmem:[%s2 + $0x18] sm:$0xff]
    %v22 = vld [vmem:[%s2 + $0x20] sm:$0xff]
    %v23 = vld [vmem:[%s2 + $0x28] sm:$0xff]
    %v24 = vld [vmem:[%s2 + $0x30] sm:$0xff]
    %v25 = vld [vmem:[%s2 + $0x38] sm:$0xff]
    %v26 = vld [vmem:[%s2 + $0x40] sm:$0x1]
    %v27 = vld [vmem:[%s2 + $0x41] sm:$0x1]
    %v28 = vld [vmem:[%s2 + $0x42] sm:$0x1]
    %v29 = vld [vmem:[%s0] sm:$0x3]
    %v30 = vld [vmem:[%s0 + $0x2] sm:$0x3]
    %v31 = vld [vmem:[%s0 + $0x4] sm:$0x3]
    %v32 = vld [vmem:[%s0 + $0x6] sm:$0x3]
    %v33 = vld [vmem:[%s0 + $0x8] sm:$0x3]
    %v34 = vld [vmem:[%s0 + $0xa] sm:$0x3]
    %v35 = vld [vmem:[%s0 + $0xc] sm:$0x3]
    %v36 = vld [vmem:[%s0 + $0xe] sm:$0x3]
    %v37 = vld [vmem:[%s0 + $0x10] sm:$0x3]
    %39 = vset.pattern.permute.xlu0 0
    %40 = vperm.xlu0 %39, %v29
    %v41 = vpop.permute.xlu0 %40
    %44 = vset.pattern.permute.xlu0 0
    %45 = vperm.xlu0 %44, %v30
    %v46 = vpop.permute.xlu0 %45
    %49 = vset.pattern.permute.xlu0 0
    %50 = vperm.xlu0 %49, %v31
    %v51 = vpop.permute.xlu0 %50
    %54 = vset.pattern.permute.xlu0 0
    %55 = vperm.xlu0 %54, %v32
    %v56 = vpop.permute.xlu0 %55
    %59 = vset.pattern.permute.xlu0 0
    %60 = vperm.xlu0 %59, %v33
    %v61 = vpop.permute.xlu0 %60
    %64 = vset.pattern.permute.xlu0 0
    %65 = vperm.xlu0 %64, %v34
    %v66 = vpop.permute.xlu0 %65
    %69 = vset.pattern.permute.xlu0 0
    %70 = vperm.xlu0 %69, %v35
    %v71 = vpop.permute.xlu0 %70
    %74 = vset.pattern.permute.xlu0 0
    %75 = vperm.xlu0 %74, %v36
    %v76 = vpop.permute.xlu0 %75
    %79 = vset.pattern.permute.xlu0 0
    %80 = vperm.xlu0 %79, %v37
    %v81 = vpop.permute.xlu0 %80
    %v83 = vlaneseq
    %v84 = vshrl.u32 %v83, 7
    %v85 = vsub.s32 0, %v84
    %v86 = vrot.slane %v26, %v85
    %v87 = vmul.f32 %v41, %v86
    %v88 = vmul.f32 %v46, %v86
    %v89 = vmul.f32 %v51, %v86
    %v90 = vmul.f32 %v56, %v86
    %v91 = vmul.f32 %v61, %v86
    %v92 = vmul.f32 %v66, %v86
    %v93 = vmul.f32 %v71, %v86
    %v94 = vmul.f32 %v76, %v86
    %v95 = vmul.f32 %v81, %v86
    %v96 = vlaneseq
    %v97 = vshrl.u32 %v96, 7
    %v98 = vsub.s32 0, %v97
    %v99 = vrot.slane %v27, %v98
    %v100 = vadd.f32 %v87, %v99
    %v101 = vadd.f32 %v88, %v99
    %v102 = vadd.f32 %v89, %v99
    %v103 = vadd.f32 %v90, %v99
    %v104 = vadd.f32 %v91, %v99
    %v105 = vadd.f32 %v92, %v99
    %v106 = vadd.f32 %v93, %v99
    %v107 = vadd.f32 %v94, %v99
    %v108 = vadd.f32 %v95, %v99
    %v109 = vld [vmem:[%s1] sm:$0x3]
    %vm110 = vcmask 523264
    %v112 = vsel %vm110, %v109, 0
    %114 = vmatprep.subr.mxu0 0.0
    %115 = vmatpush1.msra.mxu0 %v18
    %116 = vmatprep.subr.mxu0 0.0
    %117 = vmatpush1.msra.mxu0 %v19
    %118 = vmatprep.subr.mxu0 0.0
    %119 = vmatpush1.msra.mxu0 %v20
    %120 = vmatprep.subr.mxu0 0.0
    %121 = vmatpush1.msra.mxu0 %v21
    %122 = vmatprep.subr.mxu0 0.0
    %123 = vmatpush1.msra.mxu0 %v22
    %124 = vmatprep.subr.mxu0 0.0
    %125 = vmatpush1.msra.mxu0 %v23
    %126 = vmatprep.subr.mxu0 0.0
    %127 = vmatpush1.msra.mxu0 %v24
    %128 = vmatprep.subr.mxu0 0.0
    %129 = vmatpush1.msra.mxu0 %v25
    %130 = vmatprep.subr.mxu0 0.0
    %131 = vmatpush1.msra.mxu0 0.0
    %132 = vmatprep.subr.mxu0 0.0
    %133 = vmatpush1.msra.mxu0 0.0
    %134 = vmatprep.subr.mxu0 0.0
    %135 = vmatpush1.msra.mxu0 0.0
    %136 = vmatprep.subr.mxu0 0.0
    %137 = vmatpush1.msra.mxu0 0.0
    %138 = vmatprep.subr.mxu0 0.0
    %139 = vmatpush1.msra.mxu0 0.0
    %140 = vmatprep.subr.mxu0 0.0
    %141 = vmatpush1.msra.mxu0 0.0
    %142 = vmatprep.subr.mxu0 0.0
    %143 = vmatpush1.msra.mxu0 0.0
    %144 = vmatprep.subr.mxu0 0.0
    %145 = vmatpush1.msra.mxu0 0.0
    %146 = vmatprep.subr.mxu0 0.0
    %147 = vmatpush1.msra.mxu0 0.0
    %148 = vmatprep.subr.mxu0 0.0
    %149 = vmatpush1.msra.mxu0 0.0
    %150 = vmatprep.subr.mxu0 0.0
    %151 = vmatpush1.msra.mxu0 0.0
    %152 = vmatprep.subr.mxu0 0.0
    %153 = vmatpush1.msra.mxu0 0.0
    %154 = vmatprep.subr.mxu0 0.0
    %155 = vmatpush1.msra.mxu0 0.0
    %156 = vmatprep.subr.mxu0 0.0
    %157 = vmatpush1.msra.mxu0 0.0
    %158 = vmatprep.subr.mxu0 0.0
    %159 = vmatpush1.msra.mxu0 0.0
    %160 = vmatprep.subr.mxu0 0.0
    %161 = vmatpush1.msra.mxu0 0.0
    %162 = vmatprep.subr.mxu0 0.0
    %163 = vmatpush1.msra.mxu0 0.0
    %164 = vmatprep.subr.mxu0 0.0
    %165 = vmatpush1.msra.mxu0 0.0
    %166 = vmatprep.subr.mxu0 0.0
    %167 = vmatpush1.msra.mxu0 0.0
    %168 = vmatprep.subr.mxu0 0.0
    %169 = vmatpush1.msra.mxu0 0.0
    %170 = vmatprep.subr.mxu0 0.0
    %171 = vmatpush1.msra.mxu0 0.0
    %172 = vmatprep.subr.mxu0 0.0
    %173 = vmatpush1.msra.mxu0 0.0
    %174 = vmatprep.subr.mxu0 0.0
    %175 = vmatpush1.msra.mxu0 0.0
    %176 = vmatprep.subr.mxu0 0.0
    %177 = vmatpush1.msra.mxu0 0.0
    %178 = vmatprep.mubr.f32.mxu0 0.0
    %179 = vmatmul.mubr.f32.gmra.mrb[0].mxu0 %v112
    %v180 = vpop.f32.mrb[0].mxu0
    %v181 = vadd.f32 0.0, %v180
    %v182 = vpop.f32.mrb[0].mxu0
    %183 = vdwg.mxu0
    %v184 = vadd.f32 %v100, %v181
    %v185 = vtanh.pop %v184
    %v187 = vsel %vm110, %v185, 0
    %189 = vmatprep.subr.mxu0 0.0
    %190 = vmatpush1.msra.mxu0 %v18
    %191 = vmatprep.subr.mxu0 0.0
    %192 = vmatpush1.msra.mxu0 %v19
    %193 = vmatprep.subr.mxu0 0.0
    %194 = vmatpush1.msra.mxu0 %v20
    %195 = vmatprep.subr.mxu0 0.0
    %196 = vmatpush1.msra.mxu0 %v21
    %197 = vmatprep.subr.mxu0 0.0
    %198 = vmatpush1.msra.mxu0 %v22
    %199 = vmatprep.subr.mxu0 0.0
    %200 = vmatpush1.msra.mxu0 %v23
    %201 = vmatprep.subr.mxu0 0.0
    %202 = vmatpush1.msra.mxu0 %v24
    %203 = vmatprep.subr.mxu0 0.0
    %204 = vmatpush1.msra.mxu0 %v25
    %205 = vmatprep.subr.mxu0 0.0
    %206 = vmatpush1.msra.mxu0 0.0
    %207 = vmatprep.subr.mxu0 0.0
    %208 = vmatpush1.msra.mxu0 0.0
    %209 = vmatprep.subr.mxu0 0.0
    %210 = vmatpush1.msra.mxu0 0.0
    %211 = vmatprep.subr.mxu0 0.0
    %212 = vmatpush1.msra.mxu0 0.0
    %213 = vmatprep.subr.mxu0 0.0
    %214 = vmatpush1.msra.mxu0 0.0
    %215 = vmatprep.subr.mxu0 0.0
    %216 = vmatpush1.msra.mxu0 0.0
    %217 = vmatprep.subr.mxu0 0.0
    %218 = vmatpush1.msra.mxu0 0.0
    %219 = vmatprep.subr.mxu0 0.0
    %220 = vmatpush1.msra.mxu0 0.0
    %221 = vmatprep.subr.mxu0 0.0
    %222 = vmatpush1.msra.mxu0 0.0
    %223 = vmatprep.subr.mxu0 0.0
    %224 = vmatpush1.msra.mxu0 0.0
    %225 = vmatprep.subr.mxu0 0.0
    %226 = vmatpush1.msra.mxu0 0.0
    %227 = vmatprep.subr.mxu0 0.0
    %228 = vmatpush1.msra.mxu0 0.0
    %229 = vmatprep.subr.mxu0 0.0
    %230 = vmatpush1.msra.mxu0 0.0
    %231 = vmatprep.subr.mxu0 0.0
    %232 = vmatpush1.msra.mxu0 0.0
    %233 = vmatprep.subr.mxu0 0.0
    %234 = vmatpush1.msra.mxu0 0.0
    %235 = vmatprep.subr.mxu0 0.0
    %236 = vmatpush1.msra.mxu0 0.0
    %237 = vmatprep.subr.mxu0 0.0
    %238 = vmatpush1.msra.mxu0 0.0
    %239 = vmatprep.subr.mxu0 0.0
    %240 = vmatpush1.msra.mxu0 0.0
    %241 = vmatprep.subr.mxu0 0.0
    %242 = vmatpush1.msra.mxu0 0.0
    %243 = vmatprep.subr.mxu0 0.0
    %244 = vmatpush1.msra.mxu0 0.0
    %245 = vmatprep.subr.mxu0 0.0
    %246 = vmatpush1.msra.mxu0 0.0
    %247 = vmatprep.subr.mxu0 0.0
    %248 = vmatpush1.msra.mxu0 0.0
    %249 = vmatprep.subr.mxu0 0.0
    %250 = vmatpush1.msra.mxu0 0.0
    %251 = vmatprep.subr.mxu0 0.0
    %252 = vmatpush1.msra.mxu0 0.0
    %253 = vmatprep.mubr.f32.mxu0 0.0
    %254 = vmatmul.mubr.f32.gmra.mrb[0].mxu0 %v187
    %v255 = vpop.f32.mrb[0].mxu0
    %v256 = vadd.f32 0.0, %v255
    %v257 = vpop.f32.mrb[0].mxu0
    %258 = vdwg.mxu0
    %v259 = vadd.f32 %v101, %v256
    %v260 = vtanh.pop %v259
    %v262 = vsel %vm110, %v260, 0
    %264 = vmatprep.subr.mxu0 0.0
    %265 = vmatpush1.msra.mxu0 %v18
    %266 = vmatprep.subr.mxu0 0.0
    %267 = vmatpush1.msra.mxu0 %v19
    %268 = vmatprep.subr.mxu0 0.0
    %269 = vmatpush1.msra.mxu0 %v20
    %270 = vmatprep.subr.mxu0 0.0
    %271 = vmatpush1.msra.mxu0 %v21
    %272 = vmatprep.subr.mxu0 0.0
    %273 = vmatpush1.msra.mxu0 %v22
    %274 = vmatprep.subr.mxu0 0.0
    %275 = vmatpush1.msra.mxu0 %v23
    %276 = vmatprep.subr.mxu0 0.0
    %277 = vmatpush1.msra.mxu0 %v24
    %278 = vmatprep.subr.mxu0 0.0
    %279 = vmatpush1.msra.mxu0 %v25
    %280 = vmatprep.subr.mxu0 0.0
    %281 = vmatpush1.msra.mxu0 0.0
    %282 = vmatprep.subr.mxu0 0.0
    %283 = vmatpush1.msra.mxu0 0.0
    %284 = vmatprep.subr.mxu0 0.0
    %285 = vmatpush1.msra.mxu0 0.0
    %286 = vmatprep.subr.mxu0 0.0
    %287 = vmatpush1.msra.mxu0 0.0
    %288 = vmatprep.subr.mxu0 0.0
    %289 = vmatpush1.msra.mxu0 0.0
    %290 = vmatprep.subr.mxu0 0.0
    %291 = vmatpush1.msra.mxu0 0.0
    %292 = vmatprep.subr.mxu0 0.0
    %293 = vmatpush1.msra.mxu0 0.0
    %294 = vmatprep.subr.mxu0 0.0
    %295 = vmatpush1.msra.mxu0 0.0
    %296 = vmatprep.subr.mxu0 0.0
    %297 = vmatpush1.msra.mxu0 0.0
    %298 = vmatprep.subr.mxu0 0.0
    %299 = vmatpush1.msra.mxu0 0.0
    %300 = vmatprep.subr.mxu0 0.0
    %301 = vmatpush1.msra.mxu0 0.0
    %302 = vmatprep.subr.mxu0 0.0
    %303 = vmatpush1.msra.mxu0 0.0
    %304 = vmatprep.subr.mxu0 0.0
    %305 = vmatpush1.msra.mxu0 0.0
    %306 = vmatprep.subr.mxu0 0.0
    %307 = vmatpush1.msra.mxu0 0.0
    %308 = vmatprep.subr.mxu0 0.0
    %309 = vmatpush1.msra.mxu0 0.0
    %310 = vmatprep.subr.mxu0 0.0
    %311 = vmatpush1.msra.mxu0 0.0
    %312 = vmatprep.subr.mxu0 0.0
    %313 = vmatpush1.msra.mxu0 0.0
    %314 = vmatprep.subr.mxu0 0.0
    %315 = vmatpush1.msra.mxu0 0.0
    %316 = vmatprep.subr.mxu0 0.0
    %317 = vmatpush1.msra.mxu0 0.0
    %318 = vmatprep.subr.mxu0 0.0
    %319 = vmatpush1.msra.mxu0 0.0
    %320 = vmatprep.subr.mxu0 0.0
    %321 = vmatpush1.msra.mxu0 0.0
    %322 = vmatprep.subr.mxu0 0.0
    %323 = vmatpush1.msra.mxu0 0.0
    %324 = vmatprep.subr.mxu0 0.0
    %325 = vmatpush1.msra.mxu0 0.0
    %326 = vmatprep.subr.mxu0 0.0
    %327 = vmatpush1.msra.mxu0 0.0
    %328 = vmatprep.mubr.f32.mxu0 0.0
    %329 = vmatmul.mubr.f32.gmra.mrb[0].mxu0 %v262
    %v330 = vpop.f32.mrb[0].mxu0
    %v331 = vadd.f32 0.0, %v330
    %v332 = vpop.f32.mrb[0].mxu0
    %333 = vdwg.mxu0
    %v334 = vadd.f32 %v102, %v331
    %v335 = vtanh.pop %v334
    %v337 = vsel %vm110, %v335, 0
    %339 = vmatprep.subr.mxu0 0.0
    %340 = vmatpush1.msra.mxu0 %v18
    %341 = vmatprep.subr.mxu0 0.0
    %342 = vmatpush1.msra.mxu0 %v19
    %343 = vmatprep.subr.mxu0 0.0
    %344 = vmatpush1.msra.mxu0 %v20
    %345 = vmatprep.subr.mxu0 0.0
    %346 = vmatpush1.msra.mxu0 %v21
    %347 = vmatprep.subr.mxu0 0.0
    %348 = vmatpush1.msra.mxu0 %v22
    %349 = vmatprep.subr.mxu0 0.0
    %350 = vmatpush1.msra.mxu0 %v23
    %351 = vmatprep.subr.mxu0 0.0
    %352 = vmatpush1.msra.mxu0 %v24
    %353 = vmatprep.subr.mxu0 0.0
    %354 = vmatpush1.msra.mxu0 %v25
    %355 = vmatprep.subr.mxu0 0.0
    %356 = vmatpush1.msra.mxu0 0.0
    %357 = vmatprep.subr.mxu0 0.0
    %358 = vmatpush1.msra.mxu0 0.0
    %359 = vmatprep.subr.mxu0 0.0
    %360 = vmatpush1.msra.mxu0 0.0
    %361 = vmatprep.subr.mxu0 0.0
    %362 = vmatpush1.msra.mxu0 0.0
    %363 = vmatprep.subr.mxu0 0.0
    %364 = vmatpush1.msra.mxu0 0.0
    %365 = vmatprep.subr.mxu0 0.0
    %366 = vmatpush1.msra.mxu0 0.0
    %367 = vmatprep.subr.mxu0 0.0
    %368 = vmatpush1.msra.mxu0 0.0
    %369 = vmatprep.subr.mxu0 0.0
    %370 = vmatpush1.msra.mxu0 0.0
    %371 = vmatprep.subr.mxu0 0.0
    %372 = vmatpush1.msra.mxu0 0.0
    %373 = vmatprep.subr.mxu0 0.0
    %374 = vmatpush1.msra.mxu0 0.0
    %375 = vmatprep.subr.mxu0 0.0
    %376 = vmatpush1.msra.mxu0 0.0
    %377 = vmatprep.subr.mxu0 0.0
    %378 = vmatpush1.msra.mxu0 0.0
    %379 = vmatprep.subr.mxu0 0.0
    %380 = vmatpush1.msra.mxu0 0.0
    %381 = vmatprep.subr.mxu0 0.0
    %382 = vmatpush1.msra.mxu0 0.0
    %383 = vmatprep.subr.mxu0 0.0
    %384 = vmatpush1.msra.mxu0 0.0
    %385 = vmatprep.subr.mxu0 0.0
    %386 = vmatpush1.msra.mxu0 0.0
    %387 = vmatprep.subr.mxu0 0.0
    %388 = vmatpush1.msra.mxu0 0.0
    %389 = vmatprep.subr.mxu0 0.0
    %390 = vmatpush1.msra.mxu0 0.0
    %391 = vmatprep.subr.mxu0 0.0
    %392 = vmatpush1.msra.mxu0 0.0
    %393 = vmatprep.subr.mxu0 0.0
    %394 = vmatpush1.msra.mxu0 0.0
    %395 = vmatprep.subr.mxu0 0.0
    %396 = vmatpush1.msra.mxu0 0.0
    %397 = vmatprep.subr.mxu0 0.0
    %398 = vmatpush1.msra.mxu0 0.0
    %399 = vmatprep.subr.mxu0 0.0
    %400 = vmatpush1.msra.mxu0 0.0
    %401 = vmatprep.subr.mxu0 0.0
    %402 = vmatpush1.msra.mxu0 0.0
    %403 = vmatprep.mubr.f32.mxu0 0.0
    %404 = vmatmul.mubr.f32.gmra.mrb[0].mxu0 %v337
    %v405 = vpop.f32.mrb[0].mxu0
    %v406 = vadd.f32 0.0, %v405
    %v407 = vpop.f32.mrb[0].mxu0
    %408 = vdwg.mxu0
    %v409 = vadd.f32 %v103, %v406
    %v410 = vtanh.pop %v409
    %v412 = vsel %vm110, %v410, 0
    %414 = vmatprep.subr.mxu0 0.0
    %415 = vmatpush1.msra.mxu0 %v18
    %416 = vmatprep.subr.mxu0 0.0
    %417 = vmatpush1.msra.mxu0 %v19
    %418 = vmatprep.subr.mxu0 0.0
    %419 = vmatpush1.msra.mxu0 %v20
    %420 = vmatprep.subr.mxu0 0.0
    %421 = vmatpush1.msra.mxu0 %v21
    %422 = vmatprep.subr.mxu0 0.0
    %423 = vmatpush1.msra.mxu0 %v22
    %424 = vmatprep.subr.mxu0 0.0
    %425 = vmatpush1.msra.mxu0 %v23
    %426 = vmatprep.subr.mxu0 0.0
    %427 = vmatpush1.msra.mxu0 %v24
    %428 = vmatprep.subr.mxu0 0.0
    %429 = vmatpush1.msra.mxu0 %v25
    %430 = vmatprep.subr.mxu0 0.0
    %431 = vmatpush1.msra.mxu0 0.0
    %432 = vmatprep.subr.mxu0 0.0
    %433 = vmatpush1.msra.mxu0 0.0
    %434 = vmatprep.subr.mxu0 0.0
    %435 = vmatpush1.msra.mxu0 0.0
    %436 = vmatprep.subr.mxu0 0.0
    %437 = vmatpush1.msra.mxu0 0.0
    %438 = vmatprep.subr.mxu0 0.0
    %439 = vmatpush1.msra.mxu0 0.0
    %440 = vmatprep.subr.mxu0 0.0
    %441 = vmatpush1.msra.mxu0 0.0
    %442 = vmatprep.subr.mxu0 0.0
    %443 = vmatpush1.msra.mxu0 0.0
    %444 = vmatprep.subr.mxu0 0.0
    %445 = vmatpush1.msra.mxu0 0.0
    %446 = vmatprep.subr.mxu0 0.0
    %447 = vmatpush1.msra.mxu0 0.0
    %448 = vmatprep.subr.mxu0 0.0
    %449 = vmatpush1.msra.mxu0 0.0
    %450 = vmatprep.subr.mxu0 0.0
    %451 = vmatpush1.msra.mxu0 0.0
    %452 = vmatprep.subr.mxu0 0.0
    %453 = vmatpush1.msra.mxu0 0.0
    %454 = vmatprep.subr.mxu0 0.0
    %455 = vmatpush1.msra.mxu0 0.0
    %456 = vmatprep.subr.mxu0 0.0
    %457 = vmatpush1.msra.mxu0 0.0
    %458 = vmatprep.subr.mxu0 0.0
    %459 = vmatpush1.msra.mxu0 0.0
    %460 = vmatprep.subr.mxu0 0.0
    %461 = vmatpush1.msra.mxu0 0.0
    %462 = vmatprep.subr.mxu0 0.0
    %463 = vmatpush1.msra.mxu0 0.0
    %464 = vmatprep.subr.mxu0 0.0
    %465 = vmatpush1.msra.mxu0 0.0
    %466 = vmatprep.subr.mxu0 0.0
    %467 = vmatpush1.msra.mxu0 0.0
    %468 = vmatprep.subr.mxu0 0.0
    %469 = vmatpush1.msra.mxu0 0.0
    %470 = vmatprep.subr.mxu0 0.0
    %471 = vmatpush1.msra.mxu0 0.0
    %472 = vmatprep.subr.mxu0 0.0
    %473 = vmatpush1.msra.mxu0 0.0
    %474 = vmatprep.subr.mxu0 0.0
    %475 = vmatpush1.msra.mxu0 0.0
    %476 = vmatprep.subr.mxu0 0.0
    %477 = vmatpush1.msra.mxu0 0.0
    %478 = vmatprep.mubr.f32.mxu0 0.0
    %479 = vmatmul.mubr.f32.gmra.mrb[0].mxu0 %v412
    %v480 = vpop.f32.mrb[0].mxu0
    %v481 = vadd.f32 0.0, %v480
    %v482 = vpop.f32.mrb[0].mxu0
    %483 = vdwg.mxu0
    %v484 = vadd.f32 %v104, %v481
    %v485 = vtanh.pop %v484
    %v487 = vsel %vm110, %v485, 0
    %489 = vmatprep.subr.mxu0 0.0
    %490 = vmatpush1.msra.mxu0 %v18
    %491 = vmatprep.subr.mxu0 0.0
    %492 = vmatpush1.msra.mxu0 %v19
    %493 = vmatprep.subr.mxu0 0.0
    %494 = vmatpush1.msra.mxu0 %v20
    %495 = vmatprep.subr.mxu0 0.0
    %496 = vmatpush1.msra.mxu0 %v21
    %497 = vmatprep.subr.mxu0 0.0
    %498 = vmatpush1.msra.mxu0 %v22
    %499 = vmatprep.subr.mxu0 0.0
    %500 = vmatpush1.msra.mxu0 %v23
    %501 = vmatprep.subr.mxu0 0.0
    %502 = vmatpush1.msra.mxu0 %v24
    %503 = vmatprep.subr.mxu0 0.0
    %504 = vmatpush1.msra.mxu0 %v25
    %505 = vmatprep.subr.mxu0 0.0
    %506 = vmatpush1.msra.mxu0 0.0
    %507 = vmatprep.subr.mxu0 0.0
    %508 = vmatpush1.msra.mxu0 0.0
    %509 = vmatprep.subr.mxu0 0.0
    %510 = vmatpush1.msra.mxu0 0.0
    %511 = vmatprep.subr.mxu0 0.0
    %512 = vmatpush1.msra.mxu0 0.0
    %513 = vmatprep.subr.mxu0 0.0
    %514 = vmatpush1.msra.mxu0 0.0
    %515 = vmatprep.subr.mxu0 0.0
    %516 = vmatpush1.msra.mxu0 0.0
    %517 = vmatprep.subr.mxu0 0.0
    %518 = vmatpush1.msra.mxu0 0.0
    %519 = vmatprep.subr.mxu0 0.0
    %520 = vmatpush1.msra.mxu0 0.0
    %521 = vmatprep.subr.mxu0 0.0
    %522 = vmatpush1.msra.mxu0 0.0
    %523 = vmatprep.subr.mxu0 0.0
    %524 = vmatpush1.msra.mxu0 0.0
    %525 = vmatprep.subr.mxu0 0.0
    %526 = vmatpush1.msra.mxu0 0.0
    %527 = vmatprep.subr.mxu0 0.0
    %528 = vmatpush1.msra.mxu0 0.0
    %529 = vmatprep.subr.mxu0 0.0
    %530 = vmatpush1.msra.mxu0 0.0
    %531 = vmatprep.subr.mxu0 0.0
    %532 = vmatpush1.msra.mxu0 0.0
    %533 = vmatprep.subr.mxu0 0.0
    %534 = vmatpush1.msra.mxu0 0.0
    %535 = vmatprep.subr.mxu0 0.0
    %536 = vmatpush1.msra.mxu0 0.0
    %537 = vmatprep.subr.mxu0 0.0
    %538 = vmatpush1.msra.mxu0 0.0
    %539 = vmatprep.subr.mxu0 0.0
    %540 = vmatpush1.msra.mxu0 0.0
    %541 = vmatprep.subr.mxu0 0.0
    %542 = vmatpush1.msra.mxu0 0.0
    %543 = vmatprep.subr.mxu0 0.0
    %544 = vmatpush1.msra.mxu0 0.0
    %545 = vmatprep.subr.mxu0 0.0
    %546 = vmatpush1.msra.mxu0 0.0
    %547 = vmatprep.subr.mxu0 0.0
    %548 = vmatpush1.msra.mxu0 0.0
    %549 = vmatprep.subr.mxu0 0.0
    %550 = vmatpush1.msra.mxu0 0.0
    %551 = vmatprep.subr.mxu0 0.0
    %552 = vmatpush1.msra.mxu0 0.0
    %553 = vmatprep.mubr.f32.mxu0 0.0
    %554 = vmatmul.mubr.f32.gmra.mrb[0].mxu0 %v487
    %v555 = vpop.f32.mrb[0].mxu0
    %v556 = vadd.f32 0.0, %v555
    %v557 = vpop.f32.mrb[0].mxu0
    %558 = vdwg.mxu0
    %v559 = vadd.f32 %v105, %v556
    %v560 = vtanh.pop %v559
    %v562 = vsel %vm110, %v560, 0
    %564 = vmatprep.subr.mxu0 0.0
    %565 = vmatpush1.msra.mxu0 %v18
    %566 = vmatprep.subr.mxu0 0.0
    %567 = vmatpush1.msra.mxu0 %v19
    %568 = vmatprep.subr.mxu0 0.0
    %569 = vmatpush1.msra.mxu0 %v20
    %570 = vmatprep.subr.mxu0 0.0
    %571 = vmatpush1.msra.mxu0 %v21
    %572 = vmatprep.subr.mxu0 0.0
    %573 = vmatpush1.msra.mxu0 %v22
    %574 = vmatprep.subr.mxu0 0.0
    %575 = vmatpush1.msra.mxu0 %v23
    %576 = vmatprep.subr.mxu0 0.0
    %577 = vmatpush1.msra.mxu0 %v24
    %578 = vmatprep.subr.mxu0 0.0
    %579 = vmatpush1.msra.mxu0 %v25
    %580 = vmatprep.subr.mxu0 0.0
    %581 = vmatpush1.msra.mxu0 0.0
    %582 = vmatprep.subr.mxu0 0.0
    %583 = vmatpush1.msra.mxu0 0.0
    %584 = vmatprep.subr.mxu0 0.0
    %585 = vmatpush1.msra.mxu0 0.0
    %586 = vmatprep.subr.mxu0 0.0
    %587 = vmatpush1.msra.mxu0 0.0
    %588 = vmatprep.subr.mxu0 0.0
    %589 = vmatpush1.msra.mxu0 0.0
    %590 = vmatprep.subr.mxu0 0.0
    %591 = vmatpush1.msra.mxu0 0.0
    %592 = vmatprep.subr.mxu0 0.0
    %593 = vmatpush1.msra.mxu0 0.0
    %594 = vmatprep.subr.mxu0 0.0
    %595 = vmatpush1.msra.mxu0 0.0
    %596 = vmatprep.subr.mxu0 0.0
    %597 = vmatpush1.msra.mxu0 0.0
    %598 = vmatprep.subr.mxu0 0.0
    %599 = vmatpush1.msra.mxu0 0.0
    %600 = vmatprep.subr.mxu0 0.0
    %601 = vmatpush1.msra.mxu0 0.0
    %602 = vmatprep.subr.mxu0 0.0
    %603 = vmatpush1.msra.mxu0 0.0
    %604 = vmatprep.subr.mxu0 0.0
    %605 = vmatpush1.msra.mxu0 0.0
    %606 = vmatprep.subr.mxu0 0.0
    %607 = vmatpush1.msra.mxu0 0.0
    %608 = vmatprep.subr.mxu0 0.0
    %609 = vmatpush1.msra.mxu0 0.0
    %610 = vmatprep.subr.mxu0 0.0
    %611 = vmatpush1.msra.mxu0 0.0
    %612 = vmatprep.subr.mxu0 0.0
    %613 = vmatpush1.msra.mxu0 0.0
    %614 = vmatprep.subr.mxu0 0.0
    %615 = vmatpush1.msra.mxu0 0.0
    %616 = vmatprep.subr.mxu0 0.0
    %617 = vmatpush1.msra.mxu0 0.0
    %618 = vmatprep.subr.mxu0 0.0
    %619 = vmatpush1.msra.mxu0 0.0
    %620 = vmatprep.subr.mxu0 0.0
    %621 = vmatpush1.msra.mxu0 0.0
    %622 = vmatprep.subr.mxu0 0.0
    %623 = vmatpush1.msra.mxu0 0.0
    %624 = vmatprep.subr.mxu0 0.0
    %625 = vmatpush1.msra.mxu0 0.0
    %626 = vmatprep.subr.mxu0 0.0
    %627 = vmatpush1.msra.mxu0 0.0
    %628 = vmatprep.mubr.f32.mxu0 0.0
    %629 = vmatmul.mubr.f32.gmra.mrb[0].mxu0 %v562
    %v630 = vpop.f32.mrb[0].mxu0
    %v631 = vadd.f32 0.0, %v630
    %v632 = vpop.f32.mrb[0].mxu0
    %633 = vdwg.mxu0
    %v634 = vadd.f32 %v106, %v631
    %v635 = vtanh.pop %v634
    %v637 = vsel %vm110, %v635, 0
    %639 = vmatprep.subr.mxu0 0.0
    %640 = vmatpush1.msra.mxu0 %v18
    %641 = vmatprep.subr.mxu0 0.0
    %642 = vmatpush1.msra.mxu0 %v19
    %643 = vmatprep.subr.mxu0 0.0
    %644 = vmatpush1.msra.mxu0 %v20
    %645 = vmatprep.subr.mxu0 0.0
    %646 = vmatpush1.msra.mxu0 %v21
    %647 = vmatprep.subr.mxu0 0.0
    %648 = vmatpush1.msra.mxu0 %v22
    %649 = vmatprep.subr.mxu0 0.0
    %650 = vmatpush1.msra.mxu0 %v23
    %651 = vmatprep.subr.mxu0 0.0
    %652 = vmatpush1.msra.mxu0 %v24
    %653 = vmatprep.subr.mxu0 0.0
    %654 = vmatpush1.msra.mxu0 %v25
    %655 = vmatprep.subr.mxu0 0.0
    %656 = vmatpush1.msra.mxu0 0.0
    %657 = vmatprep.subr.mxu0 0.0
    %658 = vmatpush1.msra.mxu0 0.0
    %659 = vmatprep.subr.mxu0 0.0
    %660 = vmatpush1.msra.mxu0 0.0
    %661 = vmatprep.subr.mxu0 0.0
    %662 = vmatpush1.msra.mxu0 0.0
    %663 = vmatprep.subr.mxu0 0.0
    %664 = vmatpush1.msra.mxu0 0.0
    %665 = vmatprep.subr.mxu0 0.0
    %666 = vmatpush1.msra.mxu0 0.0
    %667 = vmatprep.subr.mxu0 0.0
    %668 = vmatpush1.msra.mxu0 0.0
    %669 = vmatprep.subr.mxu0 0.0
    %670 = vmatpush1.msra.mxu0 0.0
    %671 = vmatprep.subr.mxu0 0.0
    %672 = vmatpush1.msra.mxu0 0.0
    %673 = vmatprep.subr.mxu0 0.0
    %674 = vmatpush1.msra.mxu0 0.0
    %675 = vmatprep.subr.mxu0 0.0
    %676 = vmatpush1.msra.mxu0 0.0
    %677 = vmatprep.subr.mxu0 0.0
    %678 = vmatpush1.msra.mxu0 0.0
    %679 = vmatprep.subr.mxu0 0.0
    %680 = vmatpush1.msra.mxu0 0.0
    %681 = vmatprep.subr.mxu0 0.0
    %682 = vmatpush1.msra.mxu0 0.0
    %683 = vmatprep.subr.mxu0 0.0
    %684 = vmatpush1.msra.mxu0 0.0
    %685 = vmatprep.subr.mxu0 0.0
    %686 = vmatpush1.msra.mxu0 0.0
    %687 = vmatprep.subr.mxu0 0.0
    %688 = vmatpush1.msra.mxu0 0.0
    %689 = vmatprep.subr.mxu0 0.0
    %690 = vmatpush1.msra.mxu0 0.0
    %691 = vmatprep.subr.mxu0 0.0
    %692 = vmatpush1.msra.mxu0 0.0
    %693 = vmatprep.subr.mxu0 0.0
    %694 = vmatpush1.msra.mxu0 0.0
    %695 = vmatprep.subr.mxu0 0.0
    %696 = vmatpush1.msra.mxu0 0.0
    %697 = vmatprep.subr.mxu0 0.0
    %698 = vmatpush1.msra.mxu0 0.0
    %699 = vmatprep.subr.mxu0 0.0
    %700 = vmatpush1.msra.mxu0 0.0
    %701 = vmatprep.subr.mxu0 0.0
    %702 = vmatpush1.msra.mxu0 0.0
    %703 = vmatprep.mubr.f32.mxu0 0.0
    %704 = vmatmul.mubr.f32.gmra.mrb[0].mxu0 %v637
    %v705 = vpop.f32.mrb[0].mxu0
    %v706 = vadd.f32 0.0, %v705
    %v707 = vpop.f32.mrb[0].mxu0
    %708 = vdwg.mxu0
    %v709 = vadd.f32 %v107, %v706
    %v710 = vtanh.pop %v709
    %vm711 = vcmask 254976
    %712 = vst.msk [vmem:[#allocation4] sm:$0x3] %vm711, %v710
    %v714 = vsel %vm110, %v710, 0
    %716 = vmatprep.subr.mxu0 0.0
    %717 = vmatpush1.msra.mxu0 %v18
    %718 = vmatprep.subr.mxu0 0.0
    %719 = vmatpush1.msra.mxu0 %v19
    %720 = vmatprep.subr.mxu0 0.0
    %721 = vmatpush1.msra.mxu0 %v20
    %722 = vmatprep.subr.mxu0 0.0
    %723 = vmatpush1.msra.mxu0 %v21
    %724 = vmatprep.subr.mxu0 0.0
    %725 = vmatpush1.msra.mxu0 %v22
    %726 = vmatprep.subr.mxu0 0.0
    %727 = vmatpush1.msra.mxu0 %v23
    %728 = vmatprep.subr.mxu0 0.0
    %729 = vmatpush1.msra.mxu0 %v24
    %730 = vmatprep.subr.mxu0 0.0
    %731 = vmatpush1.msra.mxu0 %v25
    %732 = vmatprep.subr.mxu0 0.0
    %733 = vmatpush1.msra.mxu0 0.0
    %734 = vmatprep.subr.mxu0 0.0
    %735 = vmatpush1.msra.mxu0 0.0
    %736 = vmatprep.subr.mxu0 0.0
    %737 = vmatpush1.msra.mxu0 0.0
    %738 = vmatprep.subr.mxu0 0.0
    %739 = vmatpush1.msra.mxu0 0.0
    %740 = vmatprep.subr.mxu0 0.0
    %741 = vmatpush1.msra.mxu0 0.0
    %742 = vmatprep.subr.mxu0 0.0
    %743 = vmatpush1.msra.mxu0 0.0
    %744 = vmatprep.subr.mxu0 0.0
    %745 = vmatpush1.msra.mxu0 0.0
    %746 = vmatprep.subr.mxu0 0.0
    %747 = vmatpush1.msra.mxu0 0.0
    %748 = vmatprep.subr.mxu0 0.0
    %749 = vmatpush1.msra.mxu0 0.0
    %750 = vmatprep.subr.mxu0 0.0
    %751 = vmatpush1.msra.mxu0 0.0
    %752 = vmatprep.subr.mxu0 0.0
    %753 = vmatpush1.msra.mxu0 0.0
    %754 = vmatprep.subr.mxu0 0.0
    %755 = vmatpush1.msra.mxu0 0.0
    %756 = vmatprep.subr.mxu0 0.0
    %757 = vmatpush1.msra.mxu0 0.0
    %758 = vmatprep.subr.mxu0 0.0
    %759 = vmatpush1.msra.mxu0 0.0
    %760 = vmatprep.subr.mxu0 0.0
    %761 = vmatpush1.msra.mxu0 0.0
    %762 = vmatprep.subr.mxu0 0.0
    %763 = vmatpush1.msra.mxu0 0.0
    %764 = vmatprep.subr.mxu0 0.0
    %765 = vmatpush1.msra.mxu0 0.0
    %766 = vmatprep.subr.mxu0 0.0
    %767 = vmatpush1.msra.mxu0 0.0
    %768 = vmatprep.subr.mxu0 0.0
    %769 = vmatpush1.msra.mxu0 0.0
    %770 = vmatprep.subr.mxu0 0.0
    %771 = vmatpush1.msra.mxu0 0.0
    %772 = vmatprep.subr.mxu0 0.0
    %773 = vmatpush1.msra.mxu0 0.0
    %774 = vmatprep.subr.mxu0 0.0
    %775 = vmatpush1.msra.mxu0 0.0
    %776 = vmatprep.subr.mxu0 0.0
    %777 = vmatpush1.msra.mxu0 0.0
    %778 = vmatprep.subr.mxu0 0.0
    %779 = vmatpush1.msra.mxu0 0.0
    %780 = vmatprep.mubr.f32.mxu0 0.0
    %781 = vmatmul.mubr.f32.gmra.mrb[0].mxu0 %v714
    %v782 = vpop.f32.mrb[0].mxu0
    %v783 = vadd.f32 0.0, %v782
    %v784 = vpop.f32.mrb[0].mxu0
    %785 = vdwg.mxu0
    %v786 = vadd.f32 %v108, %v783
    %v789 = vunpack.c.l.s4 1966171168
    %v790 = vunpack.c.0.s8 %v789
    %v791 = vlaneseq
    %v792 = vshrl.u32 %v791, 7
    %v793 = vsub.s32 %v790, %v792
    %v794 = vrot.slane %v259, %v793
    %v795 = vcombine.high %v794, %v794
    %v797 = vunpack.c.l.s4 1966171168
    %v798 = vunpack.c.0.s8 %v797
    %v799 = vlaneseq
    %v800 = vshrl.u32 %v799, 7
    %v801 = vsub.s32 %v798, %v800
    %v802 = vrot.slane %v794, %v801
    %v804 = vunpack.c.l.s4 1966171168
    %v805 = vunpack.c.0.s8 %v804
    %v806 = vlaneseq
    %v807 = vshrl.u32 %v806, 7
    %v808 = vsub.s32 %v805, %v807
    %v809 = vrot.slane %v795, %v808
    %v814 = vunpack.c.l.s4 1966171168
    %v815 = vunpack.c.0.s8 %v814
    %v816 = vlaneseq
    %v817 = vshrl.u32 %v816, 7
    %v818 = vsub.s32 %v815, %v817
    %v819 = vrot.slane %v334, %v818
    %v820 = vcombine.high %v819, %v819
    %v822 = vunpack.c.l.s4 1966171168
    %v823 = vunpack.c.0.s8 %v822
    %v824 = vlaneseq
    %v825 = vshrl.u32 %v824, 7
    %v826 = vsub.s32 %v823, %v825
    %v827 = vrot.slane %v819, %v826
    %v829 = vunpack.c.l.s4 1966171168
    %v830 = vunpack.c.0.s8 %v829
    %v831 = vlaneseq
    %v832 = vshrl.u32 %v831, 7
    %v833 = vsub.s32 %v830, %v832
    %v834 = vrot.slane %v820, %v833
    %v837 = vunpack.c.l.s4 1966171168
    %v838 = vunpack.c.0.s8 %v837
    %v839 = vlaneseq
    %v840 = vshrl.u32 %v839, 7
    %v841 = vsub.s32 %v838, %v840
    %v842 = vrot.slane %v409, %v841
    %v843 = vcombine.high %v842, %v842
    %v845 = vunpack.c.l.s4 1966171168
    %v846 = vunpack.c.0.s8 %v845
    %v847 = vlaneseq
    %v848 = vshrl.u32 %v847, 7
    %v849 = vsub.s32 %v846, %v848
    %v850 = vrot.slane %v842, %v849
    %v852 = vunpack.c.l.s4 1966171168
    %v853 = vunpack.c.0.s8 %v852
    %v854 = vlaneseq
    %v855 = vshrl.u32 %v854, 7
    %v856 = vsub.s32 %v853, %v855
    %v857 = vrot.slane %v843, %v856
    %v860 = vunpack.c.l.s4 1966171168
    %v861 = vunpack.c.0.s8 %v860
    %v862 = vlaneseq
    %v863 = vshrl.u32 %v862, 7
    %v864 = vsub.s32 %v861, %v863
    %v865 = vrot.slane %v484, %v864
    %v866 = vcombine.high %v865, %v865
    %v868 = vunpack.c.l.s4 1966171168
    %v869 = vunpack.c.0.s8 %v868
    %v870 = vlaneseq
    %v871 = vshrl.u32 %v870, 7
    %v872 = vsub.s32 %v869, %v871
    %v873 = vrot.slane %v865, %v872
    %v875 = vunpack.c.l.s4 1966171168
    %v876 = vunpack.c.0.s8 %v875
    %v877 = vlaneseq
    %v878 = vshrl.u32 %v877, 7
    %v879 = vsub.s32 %v876, %v878
    %v880 = vrot.slane %v866, %v879
    %v883 = vunpack.c.l.s4 1966171168
    %v884 = vunpack.c.0.s8 %v883
    %v885 = vlaneseq
    %v886 = vshrl.u32 %v885, 7
    %v887 = vsub.s32 %v884, %v886
    %v888 = vrot.slane %v559, %v887
    %v889 = vcombine.high %v888, %v888
    %v891 = vunpack.c.l.s4 1966171168
    %v892 = vunpack.c.0.s8 %v891
    %v893 = vlaneseq
    %v894 = vshrl.u32 %v893, 7
    %v895 = vsub.s32 %v892, %v894
    %v896 = vrot.slane %v888, %v895
    %v898 = vunpack.c.l.s4 1966171168
    %v899 = vunpack.c.0.s8 %v898
    %v900 = vlaneseq
    %v901 = vshrl.u32 %v900, 7
    %v902 = vsub.s32 %v899, %v901
    %v903 = vrot.slane %v889, %v902
    %v906 = vunpack.c.l.s4 1966171168
    %v907 = vunpack.c.0.s8 %v906
    %v908 = vlaneseq
    %v909 = vshrl.u32 %v908, 7
    %v910 = vsub.s32 %v907, %v909
    %v911 = vrot.slane %v634, %v910
    %v912 = vcombine.high %v911, %v911
    %v914 = vunpack.c.l.s4 1966171168
    %v915 = vunpack.c.0.s8 %v914
    %v916 = vlaneseq
    %v917 = vshrl.u32 %v916, 7
    %v918 = vsub.s32 %v915, %v917
    %v919 = vrot.slane %v911, %v918
    %v921 = vunpack.c.l.s4 1966171168
    %v922 = vunpack.c.0.s8 %v921
    %v923 = vlaneseq
    %v924 = vshrl.u32 %v923, 7
    %v925 = vsub.s32 %v922, %v924
    %v926 = vrot.slane %v912, %v925
    %v929 = vunpack.c.l.s4 1966171168
    %v930 = vunpack.c.0.s8 %v929
    %v931 = vlaneseq
    %v932 = vshrl.u32 %v931, 7
    %v933 = vsub.s32 %v930, %v932
    %v934 = vrot.slane %v709, %v933
    %v935 = vcombine.high %v934, %v934
    %v937 = vunpack.c.l.s4 1966171168
    %v938 = vunpack.c.0.s8 %v937
    %v939 = vlaneseq
    %v940 = vshrl.u32 %v939, 7
    %v941 = vsub.s32 %v938, %v940
    %v942 = vrot.slane %v934, %v941
    %v944 = vunpack.c.l.s4 1966171168
    %v945 = vunpack.c.0.s8 %v944
    %v946 = vlaneseq
    %v947 = vshrl.u32 %v946, 7
    %v948 = vsub.s32 %v945, %v947
    %v949 = vrot.slane %v935, %v948
    %v952 = vunpack.c.l.s4 1966171168
    %v953 = vunpack.c.0.s8 %v952
    %v954 = vlaneseq
    %v955 = vshrl.u32 %v954, 7
    %v956 = vsub.s32 %v953, %v955
    %v957 = vrot.slane %v786, %v956
    %v958 = vcombine.high %v957, %v957
    %v960 = vunpack.c.l.s4 1966171168
    %v961 = vunpack.c.0.s8 %v960
    %v962 = vlaneseq
    %v963 = vshrl.u32 %v962, 7
    %v964 = vsub.s32 %v961, %v963
    %v965 = vrot.slane %v957, %v964
    %v967 = vunpack.c.l.s4 1966171168
    %v968 = vunpack.c.0.s8 %v967
    %v969 = vlaneseq
    %v970 = vshrl.u32 %v969, 7
    %v971 = vsub.s32 %v968, %v970
    %v972 = vrot.slane %v958, %v971
    %v973 = vlaneseq
    %v974 = vshrl.u32 %v973, 7
    %v975 = vsub.s32 0, %v974
    %v976 = vrot.slane %v827, %v975
    %v977 = vlaneseq
    %v978 = vshrl.u32 %v977, 7
    %v979 = vsub.s32 0, %v978
    %v980 = vrot.slane %v834, %v979
    %v983 = vlaneseq
    %v984 = vshrl.u32 %v983, 7
    %v985 = vsub.s32 0, %v984
    %v986 = vrot.slane %v850, %v985
    %v987 = vlaneseq
    %v988 = vshrl.u32 %v987, 7
    %v989 = vsub.s32 0, %v988
    %v990 = vrot.slane %v857, %v989
    %v993 = vlaneseq
    %v994 = vshrl.u32 %v993, 7
    %v995 = vsub.s32 0, %v994
    %v996 = vrot.slane %v873, %v995
    %v997 = vlaneseq
    %v998 = vshrl.u32 %v997, 7
    %v999 = vsub.s32 0, %v998
    %v1000 = vrot.slane %v880, %v999
    %v1003 = vlaneseq
    %v1004 = vshrl.u32 %v1003, 7
    %v1005 = vsub.s32 0, %v1004
    %v1006 = vrot.slane %v896, %v1005
    %v1007 = vlaneseq
    %v1008 = vshrl.u32 %v1007, 7
    %v1009 = vsub.s32 0, %v1008
    %v1010 = vrot.slane %v903, %v1009
    %v1013 = vlaneseq
    %v1014 = vshrl.u32 %v1013, 7
    %v1015 = vsub.s32 0, %v1014
    %v1016 = vrot.slane %v919, %v1015
    %v1017 = vlaneseq
    %v1018 = vshrl.u32 %v1017, 7
    %v1019 = vsub.s32 0, %v1018
    %v1020 = vrot.slane %v926, %v1019
    %v1023 = vlaneseq
    %v1024 = vshrl.u32 %v1023, 7
    %v1025 = vsub.s32 0, %v1024
    %v1026 = vrot.slane %v942, %v1025
    %v1027 = vlaneseq
    %v1028 = vshrl.u32 %v1027, 7
    %v1029 = vsub.s32 0, %v1028
    %v1030 = vrot.slane %v949, %v1029
    %v1033 = vlaneseq
    %v1034 = vshrl.u32 %v1033, 7
    %v1035 = vsub.s32 0, %v1034
    %v1036 = vrot.slane %v965, %v1035
    %v1037 = vlaneseq
    %v1038 = vshrl.u32 %v1037, 7
    %v1039 = vsub.s32 0, %v1038
    %v1040 = vrot.slane %v972, %v1039
    %vm1043 = vcmask 1040384
    %v1044 = vsel %vm1043, %v802, %v976
    %v1045 = vsel %vm1043, %v809, %v980
    %vm1046 = vcmask 1041408
    %v1047 = vsel %vm1046, %v1044, %v986
    %v1048 = vsel %vm1046, %v1045, %v990
    %vm1049 = vcmask 1042432
    %v1050 = vsel %vm1049, %v1047, %v996
    %v1051 = vsel %vm1049, %v1048, %v1000
    %vm1052 = vcmask 1043456
    %v1053 = vsel %vm1052, %v1050, %v1006
    %v1054 = vsel %vm1052, %v1051, %v1010
    %vm1055 = vcmask 1044480
    %v1056 = vsel %vm1055, %v1053, %v1016
    %v1057 = vsel %vm1055, %v1054, %v1020
    %vm1058 = vcmask 1045504
    %v1059 = vsel %vm1058, %v1056, %v1026
    %v1060 = vsel %vm1058, %v1057, %v1030
    %vm1061 = vcmask 1046528
    %v1062 = vsel %vm1061, %v1059, %v1036
    %v1063 = vsel %vm1061, %v1060, %v1040
    %v1064 = vlaneseq
    %v1065 = vshrl.u32 %v1064, 7
    %v1066 = vsub.s32 0, %v1065
    %v1067 = vrot.slane %v28, %v1066
    %v1068 = vmul.f32 %v1062, %v1067
    %v1069 = vmul.f32 %v1063, %v1067
    %v1070 = vsel %vm110, %v1068, 0.0
    %1071 = vadd.xlane.f32.xlu0 %v1070
    %v1072 = vpop.xlane.xlu0 %1071
    %v1073 = vsel %vm110, %v1069, 0.0
    %1074 = vadd.xlane.f32.xlu0 %v1073
    %v1075 = vpop.xlane.xlu0 %1074
    %v1078 = vlaneseq
    %v1079 = vand.u32 %v1078, 127
    %v1080 = vlaneseq
    %v1081 = vshrl.u32 %v1080, 7
    %v1082 = vsub.s32 %v1079, %v1081
    %v1083 = vrot.slane %v1072, %v1082
    %v1084 = vlaneseq
    %v1085 = vshrl.u32 %v1084, 7
    %v1086 = vsub.s32 %v1079, %v1085
    %v1087 = vrot.slane %v1075, %v1086
    %vm1088 = vcmask 1041409
    %v1089 = vsel %vm1088, %v1087, %v1083
    %vm1091 = vcmask 58368
    %1092 = vst.msk [vmem:[#allocation2] sm:$0x3] %vm1091, %v1089
    // Predicated region
    $region14: #{rnn_forward.1} parent=1 // pred_check
      _
    $region15: #{rnn_forward.1} parent=1 // pred_check_branch
      %1094 = sbr.rel (0) target = $region17
    $region16: #{rnn_forward.1} parent=1 // pred_region
      %s1096 = ssub.s32 32, 32
      %1097 = vsyncadd [#allocation3], %s1096
      %s1099 = sshll.u32 [#allocation2], 4
      %s1100 = int_to_ptr.vmem [resolvable:$true] %s1099
      %1102 = dma.vmem_to_hbm [thread:$0]  %s1100, 32, %s3, [#allocation3]
    $region17: #{rnn_forward.1} parent=1 // pred_fallthru
      _
    // Predicated region
    $region18: #{rnn_forward.1} parent=1 // pred_check
      _
    $region19: #{rnn_forward.1} parent=1 // pred_check_branch
      %1104 = sbr.rel (0) target = $region21
    $region20: #{rnn_forward.1} parent=1 // pred_region
      %s1106 = ssub.s32 32, 32
      %1107 = vsyncadd [#allocation5], %s1106
      %s1109 = sshll.u32 [#allocation4], 4
      %s1110 = int_to_ptr.vmem [resolvable:$true] %s1109
      %1112 = dma.vmem_to_hbm [thread:$0]  %s1110, 32, %s4, [#allocation5]
    $region21: #{rnn_forward.1} parent=1 // pred_fallthru
      _
    // Predicated region
    $region22: #{rnn_forward.1} parent=1 // pred_check
      _
    $region23: #{rnn_forward.1} parent=1 // pred_check_branch
      %1114 = sbr.rel (0) target = $region25
    $region24: #{rnn_forward.1} parent=1 // pred_region
      %1115 = dma.done [#allocation3], 32
    $region25: #{rnn_forward.1} parent=1 // pred_fallthru
      _
    // Predicated region
    $region26: #{rnn_forward.1} parent=1 // pred_check
      _
    $region27: #{rnn_forward.1} parent=1 // pred_check_branch
      %1117 = sbr.rel (0) target = $region29
    $region28: #{rnn_forward.1} parent=1 // pred_region
      %1118 = dma.done [#allocation5], 32
    $region29: #{rnn_forward.1} parent=1 // pred_fallthru
      _
    %1119 = vsyncpa [#allocation3], 1
    %1120 = vsyncpa [#allocation5], 1

</llo_original>
